<compile_context>
chip_gen: v7x
topology: tpu7x:2x2x1
jax: 0.10.0
libtpu: 0.0.40
codegen_flags: <defaults>
</compile_context>

<pallas_src>
import math

import jax
import jax.numpy as jnp
from jax.experimental import pallas as pl
from jax.experimental.pallas import tpu as pltpu


def _round_up(x: int, m: int) -> int:
    return ((x + m - 1) // m) * m


# --------------------------------------------------------------------------- #
# Kernel
# --------------------------------------------------------------------------- #
def _data_embedding_kernel(x_ref, w_ref, pe_ref, o_ref):
    """One grid step: TB whole series x one d_model column slab.

    x_ref : (TB, L, c_in)  f32
    w_ref : (3, c_in, TN)  f32   conv taps [W(t-1), W(t), W(t+1)]
    pe_ref: (L, TN)        f32   positional embedding (resident, shared)
    o_ref : (TB, L, TN)    f32
    """
    TB, L, c_in = x_ref.shape
    tn = o_ref.shape[-1]
    rows = TB * L

    x = x_ref[...]                              # (TB, L, c_in) f32
    x_prev = jnp.roll(x, 1, axis=1)             # per-series circular x[t-1]
    x_next = jnp.roll(x, -1, axis=1)            # per-series circular x[t+1]

    # Three small accumulating MXU dots (K = c_in each).  Avoids a lane-padded
    # K-concat; f32 operands keep near-exact parity with the f32 Conv1d (the
    # kernel is HBM-bound, MXU time is negligible either way).
    val = jnp.dot(x_prev.reshape(rows, c_in), w_ref[0],
                  preferred_element_type=jnp.float32)
    val = val + jnp.dot(x.reshape(rows, c_in), w_ref[1],
                        preferred_element_type=jnp.float32)
    val = val + jnp.dot(x_next.reshape(rows, c_in), w_ref[2],
                        preferred_element_type=jnp.float32)

    # Broadcast-add the (L, TN) positional embedding over the TB series.
    o_ref[...] = val.reshape(TB, L, tn) + pe_ref[...][None, :, :]


# --------------------------------------------------------------------------- #
# Parameter construction (mirrors the PyTorch module)
# --------------------------------------------------------------------------- #
def make_positional_embedding(d_model: int, length: int) -> jnp.ndarray:
    """First `length` rows of the PyTorch sinusoidal positional-embedding buffer."""
    position = jnp.arange(0, length, dtype=jnp.float32)[:, None]
    div_term = jnp.exp(
        jnp.arange(0, d_model, 2, dtype=jnp.float32) * -(math.log(10000.0) / d_model)
    )
    pe = jnp.zeros((length, d_model), jnp.float32)
    pe = pe.at[:, 0::2].set(jnp.sin(position * div_term))
    pe = pe.at[:, 1::2].set(jnp.cos(position * div_term)[:, : d_model // 2])
    return pe


def init_token_conv_weight(key, c_in: int, d_model: int) -> jnp.ndarray:
    """Kaiming-normal (fan_in, leaky_relu) init like nn.init.kaiming_normal_.

    Returns the weight in PyTorch Conv1d layout: (d_model, c_in, 3).
    """
    fan_in = c_in * 3
    negative_slope = 0.01
    gain = math.sqrt(2.0 / (1.0 + negative_slope ** 2))
    std = gain / math.sqrt(fan_in)
    return std * jax.random.normal(key, (d_model, c_in, 3), dtype=jnp.float32)


def prepare_data_embedding_params(conv_weight: jnp.ndarray, L: int):
    """Hoisted out of the per-call path: taps (3, c_in, d_model) + pe (L, d_model)."""
    d_model = conv_weight.shape[0]
    w3 = jnp.transpose(conv_weight, (2, 1, 0)).astype(jnp.float32)  # (3, c_in, d_model)
    pe = make_positional_embedding(d_model, L)                       # (L, d_model)
    return w3, pe


# --------------------------------------------------------------------------- #
# Tiling heuristic
# --------------------------------------------------------------------------- #
def _choose_batch_block(B: int, L: int, c_in: int, d_model: int,
                        vmem_budget_bytes: int = 20 * 1024 * 1024,
                        max_rows: int = 2048,
                        target_steps: int = 4) -> int:
    """Largest divisor of B whose VMEM footprint fits a conservative budget.

    Counts lane padding, double-buffered in/out blocks and the in-kernel
    temporaries; caps the row block (HBM roofline flattens past ~2K rows) and
    nudges toward >= target_steps grid steps so multi-TC chips get work.
    TB = 1 is always legal (no %8 requirement: block dims (L, c_in) are full).
    """
    lanes_c = _round_up(c_in, 128)
    lanes_d = _round_up(d_model, 128)
    per_row = (2 * lanes_c * 4        # f32 x block, double buffered
               + 3 * lanes_c * 4      # x / x_prev / x_next temporaries
               + 2 * lanes_d * 4      # matmul result + reshaped copy
               + 2 * lanes_d * 4)     # f32 output block, double buffered
    resident = (2 * 3 * _round_up(c_in, 8) * lanes_d * 4   # weight blocks
                + 2 * _round_up(L, 8) * lanes_d * 4)        # resident pe block
    cap_rows = max(L, (vmem_budget_bytes - resident) // per_row)
    cap_rows = min(cap_rows, max(L, max_rows))
    cap_tb = max(1, cap_rows // L)
    if B >= 2:
        cap_tb = min(cap_tb, max(1, B // target_steps))
    for tb in range(min(B, cap_tb), 0, -1):
        if B % tb == 0:
            return tb
    return 1


# --------------------------------------------------------------------------- #
# Forward
# --------------------------------------------------------------------------- #
@jax.jit
def data_embedding_apply(x: jnp.ndarray, w3: jnp.ndarray, pe: jnp.ndarray) -> jnp.ndarray:
    """x: (B, L, c_in) f32; w3: (3, c_in, d_model) f32; pe: (L, d_model) f32."""
    B, L, c_in = x.shape
    d_model = w3.shape[-1]

    TB = _choose_batch_block(B, L, c_in, d_model)
    grid_b = B // TB
    # Keep both v7x TensorCores busy when the batch grid collapses to one step.
    nd = 2 if (grid_b < 2 and d_model % 256 == 0) else 1
    tn = d_model // nd

    out = pl.pallas_call(
        _data_embedding_kernel,
        out_shape=jax.ShapeDtypeStruct((B, L, d_model), jnp.float32),
        grid=(grid_b, nd),
        in_specs=[
            pl.BlockSpec((TB, L, c_in), lambda b, j: (b, 0, 0)),
            pl.BlockSpec((3, c_in, tn), lambda b, j: (0, 0, j)),
            pl.BlockSpec((L, tn), lambda b, j: (0, j)),
        ],
        out_specs=pl.BlockSpec((TB, L, tn), lambda b, j: (b, 0, j)),
        compiler_params=pltpu.CompilerParams(
            dimension_semantics=("parallel", "parallel"),
            vmem_limit_bytes=48 * 1024 * 1024,
        ),
    )(x.astype(jnp.float32), w3, pe)

    # Dropout(p=0.05) is identity at inference.
    # TODO(synk): training-mode dropout (random mask + 1/(1-p) scaling) not implemented.
    return out


def data_embedding_forward(x: jnp.ndarray, conv_weight: jnp.ndarray) -> jnp.ndarray:
    """x: (B, L, c_in) f32; conv_weight: (d_model, c_in, 3) f32 -> (B, L, d_model) f32."""
    w3, pe = prepare_data_embedding_params(conv_weight, x.shape[1])
    return data_embedding_apply(x, w3, pe)


# --------------------------------------------------------------------------- #
# Pure-JAX reference (PyTorch f32 semantics)
# --------------------------------------------------------------------------- #
def _reference_forward(x, conv_weight):
    B, L, c_in = x.shape
    d_model = conv_weight.shape[0]
    w = jnp.transpose(conv_weight, (2, 1, 0))              # (3, c_in, d_model)
    x_prev = jnp.roll(x, 1, axis=1)
    x_next = jnp.roll(x, -1, axis=1)
    hp = jax.lax.Precision.HIGHEST
    val = (jnp.einsum("blc,cd->bld", x_prev, w[0], precision=hp)
           + jnp.einsum("blc,cd->bld", x, w[1], precision=hp)
           + jnp.einsum("blc,cd->bld", x_next, w[2], precision=hp))
    pe = make_positional_embedding(d_model, L)
    return val + pe[None, :, :]


if __name__ == "__main__":
    key = jax.random.PRNGKey(0)
    k_x, k_w = jax.random.split(key)

    B, L, c_in, d_model = 2, 16, 4, 32
    x = jax.random.normal(k_x, (B, L, c_in), dtype=jnp.float32)
    conv_weight = init_token_conv_weight(k_w, c_in, d_model)

    out = jax.block_until_ready(data_embedding_forward(x, conv_weight))
    assert out.shape == (B, L, d_model), f"bad output shape {out.shape}"

    ref = _reference_forward(x, conv_weight)
    assert jnp.allclose(out, ref, atol=5e-2, rtol=5e-2), "mismatch vs f32 reference"

    print("KERNEL_OK")
</pallas_src>

<mosaic_0001>
module attributes {stable_mosaic.version = 11 : i64} {
  func.func @_data_embedding_kernel(%arg0: i32, %arg1: i32, %arg2: memref<1x16x4xf32, #tpu.memory_space<vmem>>, %arg3: memref<3x4x32xf32, #tpu.memory_space<vmem>>, %arg4: memref<16x32xf32, #tpu.memory_space<vmem>>, %arg5: memref<1x16x32xf32, #tpu.memory_space<vmem>>) attributes {dimension_semantics = [#tpu.dimension_semantics<parallel>, #tpu.dimension_semantics<parallel>], iteration_bounds = array<i64: 2, 1>, scalar_prefetch = 0 : i64, scratch_operands = 0 : i64, tpu.core_type = #tpu.core_type<tc>, window_params = [{transform_indices = @transform_0, window_bounds = array<i64: 1, 16, 4>}, {transform_indices = @transform_1, window_bounds = array<i64: 3, 4, 32>}, {transform_indices = @transform_2, window_bounds = array<i64: 16, 32>}, {transform_indices = @transform_3, window_bounds = array<i64: 1, 16, 32>}]} {
    %c0 = arith.constant 0 : index
    %c0_0 = arith.constant 0 : index
    %c0_1 = arith.constant 0 : index
    %0 = vector.load %arg2[%c0, %c0_0, %c0_1] : memref<1x16x4xf32, #tpu.memory_space<vmem>>, vector<1x16x4xf32>
    %1 = vector.extract_strided_slice %0 {offsets = [0, 15, 0], sizes = [1, 1, 4], strides = [1, 1, 1]} : vector<1x16x4xf32> to vector<1x1x4xf32>
    %2 = vector.extract_strided_slice %0 {offsets = [0, 0, 0], sizes = [1, 15, 4], strides = [1, 1, 1]} : vector<1x16x4xf32> to vector<1x15x4xf32>
    %3 = tpu.concatenate %1, %2 in 1 : vector<1x1x4xf32>, vector<1x15x4xf32> -> vector<1x16x4xf32>
    %4 = vector.extract_strided_slice %0 {offsets = [0, 1, 0], sizes = [1, 15, 4], strides = [1, 1, 1]} : vector<1x16x4xf32> to vector<1x15x4xf32>
    %5 = vector.extract_strided_slice %0 {offsets = [0, 0, 0], sizes = [1, 1, 4], strides = [1, 1, 1]} : vector<1x16x4xf32> to vector<1x1x4xf32>
    %6 = tpu.concatenate %4, %5 in 1 : vector<1x15x4xf32>, vector<1x1x4xf32> -> vector<1x16x4xf32>
    %7 = vector.shape_cast %3 : vector<1x16x4xf32> to vector<16x4xf32>
    %c0_2 = arith.constant 0 : index
    %c0_3 = arith.constant 0 : index
    %c0_4 = arith.constant 0 : index
    %8 = vector.load %arg3[%c0_2, %c0_3, %c0_4] : memref<3x4x32xf32, #tpu.memory_space<vmem>>, vector<1x4x32xf32>
    %9 = vector.shape_cast %8 : vector<1x4x32xf32> to vector<4x32xf32>
    %cst = arith.constant dense<0.000000e+00> : vector<16x32xf32>
    %10 = tpu.matmul %7, %9, %cst {dimension_numbers = #tpu.dot_dimension_numbers<[1], [0], [0], [1], [0, 0, 1, 1], [], []>} : vector<16x4xf32>, vector<4x32xf32>, vector<16x32xf32> -> vector<16x32xf32>
    %11 = vector.shape_cast %0 : vector<1x16x4xf32> to vector<16x4xf32>
    %c1 = arith.constant 1 : index
    %c0_5 = arith.constant 0 : index
    %c0_6 = arith.constant 0 : index
    %12 = vector.load %arg3[%c1, %c0_5, %c0_6] : memref<3x4x32xf32, #tpu.memory_space<vmem>>, vector<1x4x32xf32>
    %13 = vector.shape_cast %12 : vector<1x4x32xf32> to vector<4x32xf32>
    %cst_7 = arith.constant dense<0.000000e+00> : vector<16x32xf32>
    %14 = tpu.matmul %11, %13, %cst_7 {dimension_numbers = #tpu.dot_dimension_numbers<[1], [0], [0], [1], [0, 0, 1, 1], [], []>} : vector<16x4xf32>, vector<4x32xf32>, vector<16x32xf32> -> vector<16x32xf32>
    %15 = arith.addf %10, %14 : vector<16x32xf32>
    %16 = vector.shape_cast %6 : vector<1x16x4xf32> to vector<16x4xf32>
    %c2 = arith.constant 2 : index
    %c0_8 = arith.constant 0 : index
    %c0_9 = arith.constant 0 : index
    %17 = vector.load %arg3[%c2, %c0_8, %c0_9] : memref<3x4x32xf32, #tpu.memory_space<vmem>>, vector<1x4x32xf32>
    %18 = vector.shape_cast %17 : vector<1x4x32xf32> to vector<4x32xf32>
    %cst_10 = arith.constant dense<0.000000e+00> : vector<16x32xf32>
    %19 = tpu.matmul %16, %18, %cst_10 {dimension_numbers = #tpu.dot_dimension_numbers<[1], [0], [0], [1], [0, 0, 1, 1], [], []>} : vector<16x4xf32>, vector<4x32xf32>, vector<16x32xf32> -> vector<16x32xf32>
    %20 = arith.addf %15, %19 : vector<16x32xf32>
    %21 = vector.shape_cast %20 : vector<16x32xf32> to vector<1x16x32xf32>
    %c0_11 = arith.constant 0 : index
    %c0_12 = arith.constant 0 : index
    %22 = vector.load %arg4[%c0_11, %c0_12] : memref<16x32xf32, #tpu.memory_space<vmem>>, vector<16x32xf32>
    %23 = vector.shape_cast %22 : vector<16x32xf32> to vector<1x16x32xf32>
    %24 = arith.addf %21, %23 : vector<1x16x32xf32>
    %c0_13 = arith.constant 0 : index
    %c0_14 = arith.constant 0 : index
    %c0_15 = arith.constant 0 : index
    %25 = vector.load %arg5[%c0_13, %c0_14, %c0_15] : memref<1x16x32xf32, #tpu.memory_space<vmem>>, vector<1x16x32xf32>
    tpu.vector_store %arg5[%c0_13, %c0_14, %c0_15], %24 {strides = array<i32>} : memref<1x16x32xf32, #tpu.memory_space<vmem>>, vector<1x16x32xf32>,
    return
  }
  func.func @transform_0(%arg0: i32, %arg1: i32) -> (i32, i32, i32) {
    %c0_i32 = arith.constant 0 : i32
    %c0_i32_0 = arith.constant 0 : i32
    %c0_i32_1 = arith.constant 0 : i32
    return %arg0, %c0_i32, %c0_i32_0 : i32, i32, i32
  }
  func.func @transform_1(%arg0: i32, %arg1: i32) -> (i32, i32, i32) {
    %c0_i32 = arith.constant 0 : i32
    %c0_i32_0 = arith.constant 0 : i32
    %c0_i32_1 = arith.constant 0 : i32
    return %c0_i32, %c0_i32_0, %arg1 : i32, i32, i32
  }
  func.func @transform_2(%arg0: i32, %arg1: i32) -> (i32, i32) {
    %c0_i32 = arith.constant 0 : i32
    %c0_i32_0 = arith.constant 0 : i32
    return %c0_i32, %arg1 : i32, i32
  }
  func.func @transform_3(%arg0: i32, %arg1: i32) -> (i32, i32, i32) {
    %c0_i32 = arith.constant 0 : i32
    %c0_i32_0 = arith.constant 0 : i32
    return %arg0, %c0_i32, %arg1 : i32, i32, i32
  }
}

</mosaic_0001>

<llo_original>
// kernel: data_embedding_apply.1
$region0: #{data_embedding_apply.1}
  #allocation0 [shape = 'u32[]', space=smem, size = 0x4, offset = 0x4, fixed_abs, tag = 'smem constant byte address 0x4 - core index']
  #allocation1 [shape = 'u32[144,128]{1,0:T(1,128)}', space=vmem, size = 0x12000, scoped, tag = 'internal scratch']
  %s0 = inlined_call_operand.vmem [shape: f32[2,16,4], index: 0, kind: input, shape index: {}]
  %s1 = inlined_call_operand.vmem [shape: f32[3,4,32], index: 1, kind: input, shape index: {}]
  %s2 = inlined_call_operand.vmem [shape: f32[16,32], index: 2, kind: input, shape index: {}]
  %s3 = inlined_call_operand.hbm [shape: f32[2,16,32], index: 3, kind: output, shape index: {}]
  %s4 = sld [smem:[#allocation0]]
  $region45: #{data_embedding_apply.1} parent=0
    _
  %s6 = ssub.s32 1, %s4
  %s7 = scalar_select 0, %s6, %s4
  $region1: #{data_embedding_apply.1} parent=0
    #allocation2 [shape = 'u8[16384]{0}', space=vmem, size = 0x4000, scoped, tag = 'output window, operand 0']
    #allocation3 [shape = 's32[2]{0}', space=sflag, size = 0x8, scoped, tag = 'scoped memory for data_embedding_apply.1']
    %8 = vsyncpa [#allocation3], 0
    %s9 = scalar_lea.sflag [#allocation3], 1
    %10 = vsyncpa %s9, 0
    loop: start=0, step=1, limit=4
    $region2: #{data_embedding_apply.1} parent=1 // loop_pre_header
      _
    $region3: #{data_embedding_apply.1} parent=1 // loop_header
      %s12 = sphi 0, %s16
      %p13 = scmp.ge.s32.totalorder %s12, 4
      %s19 = sphi 0, %s31
      %s20 = sphi 0, %s27
      %s21 = sphi 0, %s19
      %s22 = sphi 0, %s20
      %s23 = sphi 0, %s21
      %s24 = sphi 0, %s22
      %s34 = sphi 0, %s36
      %s37 = sphi 0, %s34
      %s38 = sphi 0, %s37
      %s54 = sphi 0, %s38
      %s60 = sphi 0, %s62
      %s63 = sphi 0, %s60
      %s64 = sphi 0, %s63
      %s80 = sphi 0, %s64
      %s86 = sphi 0, %s88
      %s89 = sphi 0, %s86
      %s90 = sphi 0, %s89
      %s106 = sphi 0, %s90
      %s114 = sphi 0, %s116
      %s117 = sphi 0, %s114
      %s118 = sphi 0, %s117
      %s134 = sphi 0, %s118
    $region4: #{data_embedding_apply.1} parent=1 // loop_header_branch
      %15 = sbr.rel (%p13) target = $region8
    $region5: #{data_embedding_apply.1} parent=1 // loop_body
      %s17 = ssub.s32 %s12, 1
      %s18 = ssub.s32 %s12, 2
      %s25 = sadd.s32 1, %s20
      %p26 = scmp.ge.s32.totalorder %s25, 1
      %s27 = scalar_select %p26, 0, %s25
      %s28 = sadd.s32 1, %s19
      %s29 = scalar_select %p26, %s28, %s19
      %p30 = scmp.ge.s32.totalorder %s29, 2
      %s31 = scalar_select %p30, 0, %s29
      %s32 = ssub.s32 %s19, %s31
      %p33 = scmp.eq.s32.totalorder %s32, 0
      %s35 = sadd.s32 %s34, 1
      %s36 = scalar_select %p33, %s34, %s35
      %p39 = pneg %p33
      %p40 = scmp.eq.s32.totalorder %s12, 1
      %p41 = por %p39, %p40
      %p42 = scmp.ne.s32.totalorder %s34, %s37
      %p43 = scmp.eq.s32.totalorder %s12, 0
      %p44 = por %p42, %p43
      %p45 = scmp.ne.s32.totalorder %s34, %s37
      %p46 = scmp.eq.s32.totalorder %s17, 1
      %p47 = por %p45, %p46
      %p48 = scmp.ne.s32.totalorder %s37, %s38
      %p49 = scmp.eq.s32.totalorder %s17, 0
      %p50 = por %p48, %p49
      %p51 = scmp.ne.s32.totalorder %s37, %s38
      %p52 = scmp.eq.s32.totalorder %s18, 1
      %p53 = por %p51, %p52
      %p55 = scmp.ne.s32.totalorder %s38, %s54
      %p56 = scmp.eq.s32.totalorder %s18, 0
      %p57 = por %p55, %p56
      %s58 = ssub.s32 %s20, %s27
      %p59 = scmp.eq.s32.totalorder %s58, 0
      %s61 = sadd.s32 %s60, 1
      %s62 = scalar_select %p59, %s60, %s61
      %p65 = pneg %p59
      %p66 = scmp.eq.s32.totalorder %s12, 1
      %p67 = por %p65, %p66
      %p68 = scmp.ne.s32.totalorder %s60, %s63
      %p69 = scmp.eq.s32.totalorder %s12, 0
      %p70 = por %p68, %p69
      %p71 = scmp.ne.s32.totalorder %s60, %s63
      %p72 = scmp.eq.s32.totalorder %s17, 1
      %p73 = por %p71, %p72
      %p74 = scmp.ne.s32.totalorder %s63, %s64
      %p75 = scmp.eq.s32.totalorder %s17, 0
      %p76 = por %p74, %p75
      %p77 = scmp.ne.s32.totalorder %s63, %s64
      %p78 = scmp.eq.s32.totalorder %s18, 1
      %p79 = por %p77, %p78
      %p81 = scmp.ne.s32.totalorder %s64, %s80
      %p82 = scmp.eq.s32.totalorder %s18, 0
      %p83 = por %p81, %p82
      %s84 = ssub.s32 %s20, %s27
      %p85 = scmp.eq.s32.totalorder %s84, 0
      %s87 = sadd.s32 %s86, 1
      %s88 = scalar_select %p85, %s86, %s87
      %p91 = pneg %p85
      %p92 = scmp.eq.s32.totalorder %s12, 1
      %p93 = por %p91, %p92
      %p94 = scmp.ne.s32.totalorder %s86, %s89
      %p95 = scmp.eq.s32.totalorder %s12, 0
      %p96 = por %p94, %p95
      %p97 = scmp.ne.s32.totalorder %s86, %s89
      %p98 = scmp.eq.s32.totalorder %s17, 1
      %p99 = por %p97, %p98
      %p100 = scmp.ne.s32.totalorder %s89, %s90
      %p101 = scmp.eq.s32.totalorder %s17, 0
      %p102 = por %p100, %p101
      %p103 = scmp.ne.s32.totalorder %s89, %s90
      %p104 = scmp.eq.s32.totalorder %s18, 1
      %p105 = por %p103, %p104
      %p107 = scmp.ne.s32.totalorder %s90, %s106
      %p108 = scmp.eq.s32.totalorder %s18, 0
      %p109 = por %p107, %p108
      %s110 = ssub.s32 %s19, %s31
      %s111 = ssub.s32 %s20, %s27
      %s112 = sor.u32 %s110, %s111
      %p113 = scmp.eq.s32.totalorder %s112, 0
      %s115 = sadd.s32 %s114, 1
      %s116 = scalar_select %p113, %s114, %s115
      %p119 = pneg %p113
      %p120 = scmp.eq.s32.totalorder %s12, 1
      %p121 = por %p119, %p120
      %p122 = scmp.ne.s32.totalorder %s114, %s117
      %p123 = scmp.eq.s32.totalorder %s12, 0
      %p124 = por %p122, %p123
      %p125 = scmp.ne.s32.totalorder %s114, %s117
      %p126 = scmp.eq.s32.totalorder %s17, 1
      %p127 = por %p125, %p126
      %p128 = scmp.ne.s32.totalorder %s117, %s118
      %p129 = scmp.eq.s32.totalorder %s17, 0
      %p130 = por %p128, %p129
      %p131 = scmp.ne.s32.totalorder %s117, %s118
      %p132 = scmp.eq.s32.totalorder %s18, 1
      %p133 = por %p131, %p132
      %p135 = scmp.ne.s32.totalorder %s118, %s134
      %p136 = scmp.eq.s32.totalorder %s18, 0
      %p137 = por %p135, %p136
      %p138 = scmp.le.s32.totalorder 1, %s12
      %p139 = scmp.lt.s32.totalorder %s12, 3
      %p140 = pnand %p138, %p139
      %p141 = pneg %p140
      // Predicated region
      $region9: #{data_embedding_apply.1} parent=5 // pred_check
        _
      $region10: #{data_embedding_apply.1} parent=5 // pred_check_branch
        %143 = sbr.rel (%p140) target = $region12
      $region11: #{data_embedding_apply.1} parent=5 // pred_region
        %s144 = ssub.s32 %s12, 1
        // Predicated region
        $region13: #{data_embedding_apply.1} parent=11 // pred_check
          %p145 = pneg %p76
        $region14: #{data_embedding_apply.1} parent=11 // pred_check_branch
          %147 = sbr.rel (%p145) target = $region16
        $region15: #{data_embedding_apply.1} parent=11 // pred_region
          %p148 = scmp.lt.s32.totalorder %s22, 0
          %s149 = scalar_select %p148, %s22, 0
          %s150 = smul.addr %s149, 4
          %s151 = scalar_lea.vmem %s1, %s150
        $region16: #{data_embedding_apply.1} parent=11 // pred_fallthru
          _
        // Predicated region
        $region17: #{data_embedding_apply.1} parent=11 // pred_check
          %p152 = pneg %p102
        $region18: #{data_embedding_apply.1} parent=11 // pred_check_branch
          %154 = sbr.rel (%p152) target = $region20
        $region19: #{data_embedding_apply.1} parent=11 // pred_region
          %p155 = scmp.lt.s32.totalorder %s22, 0
          %s156 = scalar_select %p155, %s22, 0
          %s157 = smul.addr %s156, 8
          %s158 = scalar_lea.vmem %s2, %s157
        $region20: #{data_embedding_apply.1} parent=11 // pred_fallthru
          _
      $region12: #{data_embedding_apply.1} parent=5 // pred_fallthru
        _
      %p159 = scmp.lt.s32.totalorder %s12, 2
      // Predicated region
      $region21: #{data_embedding_apply.1} parent=5 // pred_check
        %p160 = pneg %p159
      $region22: #{data_embedding_apply.1} parent=5 // pred_check_branch
        %162 = sbr.rel (%p160) target = $region24
      $region23: #{data_embedding_apply.1} parent=5 // pred_region
        // Predicated region
        $region25: #{data_embedding_apply.1} parent=23 // pred_check
          %p163 = pneg %p44
        $region26: #{data_embedding_apply.1} parent=23 // pred_check_branch
          %165 = sbr.rel (%p163) target = $region28
        $region27: #{data_embedding_apply.1} parent=23 // pred_region
          %p166 = scmp.lt.s32.totalorder %s19, 1
          %s167 = scalar_select %p166, %s19, 1
          %s168 = smul.addr %s167, 2
          %s169 = smul.addr %s168, 8
          %s170 = scalar_lea.vmem %s0, %s169
        $region28: #{data_embedding_apply.1} parent=23 // pred_fallthru
          _
      $region24: #{data_embedding_apply.1} parent=5 // pred_fallthru
        _
      %p171 = scmp.le.s32.totalorder 1, %s12
      %p172 = scmp.lt.s32.totalorder %s12, 3
      %p173 = pnand %p171, %p172
      %p174 = pneg %p173
      // Predicated region
      $region29: #{data_embedding_apply.1} parent=5 // pred_check
        _
      $region30: #{data_embedding_apply.1} parent=5 // pred_check_branch
        %176 = sbr.rel (%p173) target = $region32
      $region31: #{data_embedding_apply.1} parent=5 // pred_region
        %s177 = ssub.s32 %s12, 1
        %p178 = scmp.lt.s32.totalorder %s21, 1
        %s179 = scalar_select %p178, %s21, 1
        %s180 = smul.addr %s179, 2
        %s181 = smul.addr %s180, 8
        %s182 = scalar_lea.vmem %s0, %s181
        %p183 = pneg %p50
        %p184 = pneg %p47
        %p185 = scmp.lt.s32.totalorder %s22, 0
        %s186 = scalar_select %p185, %s22, 0
        %s187 = smul.addr %s186, 4
        %s188 = scalar_lea.vmem %s1, %s187
        %p189 = pneg %p76
        %p190 = pneg %p73
        %p191 = scmp.lt.s32.totalorder %s22, 0
        %s192 = scalar_select %p191, %s22, 0
        %s193 = smul.addr %s192, 8
        %s194 = scalar_lea.vmem %s2, %s193
        %p195 = pneg %p102
        %p196 = pneg %p99
        %p197 = pneg %p130
        %p198 = pneg %p127
        %s199 = sand.u32 %s117, 1
        %s200 = scalar_lea.sflag [#allocation3], %s199
        %s201 = sand.u32 %s117, 1
        %s202 = smul.addr %s201, 16
        %s203 = scalar_lea.vmem [#allocation2], %s202
        %p204 = scmp.lt.s32.totalorder %s21, 1
        %s205 = scalar_select %p204, %s21, 1
        %s206 = smul.addr %s205, 2
        %s207 = smul.addr %s206, 8
        %s208 = scalar_lea.vmem %s0, %s207
        %p209 = scmp.lt.s32.totalorder %s22, 0
        %s210 = scalar_select %p209, %s22, 0
        %s211 = smul.addr %s210, 4
        %s212 = scalar_lea.vmem %s1, %s211
        %p213 = scmp.lt.s32.totalorder %s22, 0
        %s214 = scalar_select %p213, %s22, 0
        %s215 = smul.addr %s214, 8
        %s216 = scalar_lea.vmem %s2, %s215
        %v217 = vld [vmem:[%s208] sm:$0xff]
        %v218 = vld [vmem:[%s208 + $0x8] sm:$0xff]
        %v220 = vrot.slane %v218, 7
        %vm223 = vcmask 1040384
        %v224 = vrot.slane %v217, 7
        %v225 = vsel %vm223, %v224, %v220
        %v227 = vsel %vm223, %v220, %v224
        %vm228 = vcmask 1046528
        %v229 = vrot.slane %v217, 1
        %v230 = vrot.slane %v218, 1
        %v231 = vsel %vm228, %v229, %v230
        %v234 = vsel %vm228, %v230, %v229
        %v235 = vld [vmem:[%s212] sm:$0xf]
        %s236 = scalar_lea.vmem %s212, 4
        %v237 = vld [vmem:[%s236] sm:$0xf]
        %vm238 = vcmask 31744
        %v239 = vsel %vm238, %v217, 0
        %v241 = vsel %vm238, %v218, 0
        %vm243 = vcmask 1043456
        %v245 = vsel %vm243, %v237, 0
        %247 = vmatprep.subr.mxu0 0.0
        %248 = vmatpush1.msra.mxu0 %v245
        %249 = vmatprep.subr.mxu0 0.0
        %250 = vmatpush1.msra.mxu0 0.0
        %251 = vmatprep.subr.mxu0 0.0
        %252 = vmatpush1.msra.mxu0 0.0
        %253 = vmatprep.subr.mxu0 0.0
        %254 = vmatpush1.msra.mxu0 0.0
        %255 = vmatprep.subr.mxu0 0.0
        %256 = vmatpush1.msra.mxu0 0.0
        %257 = vmatprep.subr.mxu0 0.0
        %258 = vmatpush1.msra.mxu0 0.0
        %259 = vmatprep.subr.mxu0 0.0
        %260 = vmatpush1.msra.mxu0 0.0
        %261 = vmatprep.subr.mxu0 0.0
        %262 = vmatpush1.msra.mxu0 0.0
        %263 = vmatprep.subr.mxu0 0.0
        %264 = vmatpush1.msra.mxu0 0.0
        %265 = vmatprep.subr.mxu0 0.0
        %266 = vmatpush1.msra.mxu0 0.0
        %267 = vmatprep.subr.mxu0 0.0
        %268 = vmatpush1.msra.mxu0 0.0
        %269 = vmatprep.subr.mxu0 0.0
        %270 = vmatpush1.msra.mxu0 0.0
        %271 = vmatprep.subr.mxu0 0.0
        %272 = vmatpush1.msra.mxu0 0.0
        %273 = vmatprep.subr.mxu0 0.0
        %274 = vmatpush1.msra.mxu0 0.0
        %275 = vmatprep.subr.mxu0 0.0
        %276 = vmatpush1.msra.mxu0 0.0
        %277 = vmatprep.subr.mxu0 0.0
        %278 = vmatpush1.msra.mxu0 0.0
        %279 = vmatprep.subr.mxu0 0.0
        %280 = vmatpush1.msra.mxu0 0.0
        %281 = vmatprep.subr.mxu0 0.0
        %282 = vmatpush1.msra.mxu0 0.0
        %283 = vmatprep.subr.mxu0 0.0
        %284 = vmatpush1.msra.mxu0 0.0
        %285 = vmatprep.subr.mxu0 0.0
        %286 = vmatpush1.msra.mxu0 0.0
        %287 = vmatprep.subr.mxu0 0.0
        %288 = vmatpush1.msra.mxu0 0.0
        %289 = vmatprep.subr.mxu0 0.0
        %290 = vmatpush1.msra.mxu0 0.0
        %291 = vmatprep.subr.mxu0 0.0
        %292 = vmatpush1.msra.mxu0 0.0
        %293 = vmatprep.subr.mxu0 0.0
        %294 = vmatpush1.msra.mxu0 0.0
        %295 = vmatprep.subr.mxu0 0.0
        %296 = vmatpush1.msra.mxu0 0.0
        %297 = vmatprep.subr.mxu0 0.0
        %298 = vmatpush1.msra.mxu0 0.0
        %299 = vmatprep.subr.mxu0 0.0
        %300 = vmatpush1.msra.mxu0 0.0
        %301 = vmatprep.subr.mxu0 0.0
        %302 = vmatpush1.msra.mxu0 0.0
        %303 = vmatprep.subr.mxu0 0.0
        %304 = vmatpush1.msra.mxu0 0.0
        %305 = vmatprep.subr.mxu0 0.0
        %306 = vmatpush1.msra.mxu0 0.0
        %307 = vmatprep.subr.mxu0 0.0
        %308 = vmatpush1.msra.mxu0 0.0
        %309 = vmatprep.subr.mxu0 0.0
        %310 = vmatpush1.msra.mxu0 0.0
        %311 = vmatprep.mubr.f32.mxu0 0.0
        %312 = vmatmul.mubr.f32.gmra.mrb[0].mxu0 %v239
        %v313 = vpop.f32.mrb[0].mxu0
        %v314 = vadd.f32 0.0, %v313
        %v315 = vpop.f32.mrb[0].mxu0
        %316 = vmatprep.mubr.f32.mxu0 0.0
        %317 = vmatmul.mubr.f32.gmra.mrb[0].mxu0 %v241
        %v318 = vpop.f32.mrb[0].mxu0
        %v319 = vadd.f32 0.0, %v318
        %v320 = vpop.f32.mrb[0].mxu0
        %321 = vdwg.mxu0
        %v323 = vsel %vm238, %v227, 0
        %v325 = vsel %vm238, %v225, 0
        %v328 = vsel %vm243, %v235, 0
        %330 = vmatprep.subr.mxu0 0.0
        %331 = vmatpush1.msra.mxu0 %v328
        %332 = vmatprep.subr.mxu0 0.0
        %333 = vmatpush1.msra.mxu0 0.0
        %334 = vmatprep.subr.mxu0 0.0
        %335 = vmatpush1.msra.mxu0 0.0
        %336 = vmatprep.subr.mxu0 0.0
        %337 = vmatpush1.msra.mxu0 0.0
        %338 = vmatprep.subr.mxu0 0.0
        %339 = vmatpush1.msra.mxu0 0.0
        %340 = vmatprep.subr.mxu0 0.0
        %341 = vmatpush1.msra.mxu0 0.0
        %342 = vmatprep.subr.mxu0 0.0
        %343 = vmatpush1.msra.mxu0 0.0
        %344 = vmatprep.subr.mxu0 0.0
        %345 = vmatpush1.msra.mxu0 0.0
        %346 = vmatprep.subr.mxu0 0.0
        %347 = vmatpush1.msra.mxu0 0.0
        %348 = vmatprep.subr.mxu0 0.0
        %349 = vmatpush1.msra.mxu0 0.0
        %350 = vmatprep.subr.mxu0 0.0
        %351 = vmatpush1.msra.mxu0 0.0
        %352 = vmatprep.subr.mxu0 0.0
        %353 = vmatpush1.msra.mxu0 0.0
        %354 = vmatprep.subr.mxu0 0.0
        %355 = vmatpush1.msra.mxu0 0.0
        %356 = vmatprep.subr.mxu0 0.0
        %357 = vmatpush1.msra.mxu0 0.0
        %358 = vmatprep.subr.mxu0 0.0
        %359 = vmatpush1.msra.mxu0 0.0
        %360 = vmatprep.subr.mxu0 0.0
        %361 = vmatpush1.msra.mxu0 0.0
        %362 = vmatprep.subr.mxu0 0.0
        %363 = vmatpush1.msra.mxu0 0.0
        %364 = vmatprep.subr.mxu0 0.0
        %365 = vmatpush1.msra.mxu0 0.0
        %366 = vmatprep.subr.mxu0 0.0
        %367 = vmatpush1.msra.mxu0 0.0
        %368 = vmatprep.subr.mxu0 0.0
        %369 = vmatpush1.msra.mxu0 0.0
        %370 = vmatprep.subr.mxu0 0.0
        %371 = vmatpush1.msra.mxu0 0.0
        %372 = vmatprep.subr.mxu0 0.0
        %373 = vmatpush1.msra.mxu0 0.0
        %374 = vmatprep.subr.mxu0 0.0
        %375 = vmatpush1.msra.mxu0 0.0
        %376 = vmatprep.subr.mxu0 0.0
        %377 = vmatpush1.msra.mxu0 0.0
        %378 = vmatprep.subr.mxu0 0.0
        %379 = vmatpush1.msra.mxu0 0.0
        %380 = vmatprep.subr.mxu0 0.0
        %381 = vmatpush1.msra.mxu0 0.0
        %382 = vmatprep.subr.mxu0 0.0
        %383 = vmatpush1.msra.mxu0 0.0
        %384 = vmatprep.subr.mxu0 0.0
        %385 = vmatpush1.msra.mxu0 0.0
        %386 = vmatprep.subr.mxu0 0.0
        %387 = vmatpush1.msra.mxu0 0.0
        %388 = vmatprep.subr.mxu0 0.0
        %389 = vmatpush1.msra.mxu0 0.0
        %390 = vmatprep.subr.mxu0 0.0
        %391 = vmatpush1.msra.mxu0 0.0
        %392 = vmatprep.subr.mxu0 0.0
        %393 = vmatpush1.msra.mxu0 0.0
        %394 = vmatprep.mubr.f32.mxu0 0.0
        %395 = vmatmul.mubr.f32.gmra.mrb[0].mxu0 %v323
        %v396 = vpop.f32.mrb[0].mxu0
        %v397 = vadd.f32 %v314, %v396
        %v398 = vpop.f32.mrb[0].mxu0
        %399 = vmatprep.mubr.f32.mxu0 0.0
        %400 = vmatmul.mubr.f32.gmra.mrb[0].mxu0 %v325
        %v401 = vpop.f32.mrb[0].mxu0
        %v402 = vadd.f32 %v319, %v401
        %v403 = vpop.f32.mrb[0].mxu0
        %404 = vdwg.mxu0
        %s405 = scalar_lea.vmem %s212, 8
        %v406 = vld [vmem:[%s405] sm:$0xf]
        %v407 = vsel %vm238, %v231, 0
        %v410 = vsel %vm238, %v234, 0
        %v413 = vsel %vm243, %v406, 0
        %415 = vmatprep.subr.mxu0 0.0
        %416 = vmatpush1.msra.mxu0 %v413
        %417 = vmatprep.subr.mxu0 0.0
        %418 = vmatpush1.msra.mxu0 0.0
        %419 = vmatprep.subr.mxu0 0.0
        %420 = vmatpush1.msra.mxu0 0.0
        %421 = vmatprep.subr.mxu0 0.0
        %422 = vmatpush1.msra.mxu0 0.0
        %423 = vmatprep.subr.mxu0 0.0
        %424 = vmatpush1.msra.mxu0 0.0
        %425 = vmatprep.subr.mxu0 0.0
        %426 = vmatpush1.msra.mxu0 0.0
        %427 = vmatprep.subr.mxu0 0.0
        %428 = vmatpush1.msra.mxu0 0.0
        %429 = vmatprep.subr.mxu0 0.0
        %430 = vmatpush1.msra.mxu0 0.0
        %431 = vmatprep.subr.mxu0 0.0
        %432 = vmatpush1.msra.mxu0 0.0
        %433 = vmatprep.subr.mxu0 0.0
        %434 = vmatpush1.msra.mxu0 0.0
        %435 = vmatprep.subr.mxu0 0.0
        %436 = vmatpush1.msra.mxu0 0.0
        %437 = vmatprep.subr.mxu0 0.0
        %438 = vmatpush1.msra.mxu0 0.0
        %439 = vmatprep.subr.mxu0 0.0
        %440 = vmatpush1.msra.mxu0 0.0
        %441 = vmatprep.subr.mxu0 0.0
        %442 = vmatpush1.msra.mxu0 0.0
        %443 = vmatprep.subr.mxu0 0.0
        %444 = vmatpush1.msra.mxu0 0.0
        %445 = vmatprep.subr.mxu0 0.0
        %446 = vmatpush1.msra.mxu0 0.0
        %447 = vmatprep.subr.mxu0 0.0
        %448 = vmatpush1.msra.mxu0 0.0
        %449 = vmatprep.subr.mxu0 0.0
        %450 = vmatpush1.msra.mxu0 0.0
        %451 = vmatprep.subr.mxu0 0.0
        %452 = vmatpush1.msra.mxu0 0.0
        %453 = vmatprep.subr.mxu0 0.0
        %454 = vmatpush1.msra.mxu0 0.0
        %455 = vmatprep.subr.mxu0 0.0
        %456 = vmatpush1.msra.mxu0 0.0
        %457 = vmatprep.subr.mxu0 0.0
        %458 = vmatpush1.msra.mxu0 0.0
        %459 = vmatprep.subr.mxu0 0.0
        %460 = vmatpush1.msra.mxu0 0.0
        %461 = vmatprep.subr.mxu0 0.0
        %462 = vmatpush1.msra.mxu0 0.0
        %463 = vmatprep.subr.mxu0 0.0
        %464 = vmatpush1.msra.mxu0 0.0
        %465 = vmatprep.subr.mxu0 0.0
        %466 = vmatpush1.msra.mxu0 0.0
        %467 = vmatprep.subr.mxu0 0.0
        %468 = vmatpush1.msra.mxu0 0.0
        %469 = vmatprep.subr.mxu0 0.0
        %470 = vmatpush1.msra.mxu0 0.0
        %471 = vmatprep.subr.mxu0 0.0
        %472 = vmatpush1.msra.mxu0 0.0
        %473 = vmatprep.subr.mxu0 0.0
        %474 = vmatpush1.msra.mxu0 0.0
        %475 = vmatprep.subr.mxu0 0.0
        %476 = vmatpush1.msra.mxu0 0.0
        %477 = vmatprep.subr.mxu0 0.0
        %478 = vmatpush1.msra.mxu0 0.0
        %479 = vmatprep.mubr.f32.mxu0 0.0
        %480 = vmatmul.mubr.f32.gmra.mrb[0].mxu0 %v407
        %v481 = vpop.f32.mrb[0].mxu0
        %v482 = vadd.f32 0.0, %v481
        %v483 = vpop.f32.mrb[0].mxu0
        %484 = vmatprep.mubr.f32.mxu0 0.0
        %485 = vmatmul.mubr.f32.gmra.mrb[0].mxu0 %v410
        %v486 = vpop.f32.mrb[0].mxu0
        %v487 = vadd.f32 0.0, %v486
        %v488 = vpop.f32.mrb[0].mxu0
        %489 = vdwg.mxu0
        %v490 = vadd.f32 %v397, %v482
        %v491 = vadd.f32 %v402, %v487
        %v492 = vld [vmem:[%s216] sm:$0xff]
        %v493 = vld [vmem:[%s216 + $0x8] sm:$0xff]
        %v494 = vadd.f32 %v490, %v492
        %v495 = vadd.f32 %v491, %v493
        %vm496 = vcmask 261120
        %497 = vst.msk [vmem:[%s203] sm:$0xff] %vm496, %v494
        %498 = vst.msk [vmem:[%s203 + $0x8] sm:$0xff] %vm496, %v495
        %s499 = sand.u32 %s117, 1
        %s500 = scalar_lea.sflag [#allocation3], %s499
        %s501 = sand.u32 %s117, 1
        %s502 = smul.addr %s501, 16
        %s503 = scalar_lea.vmem [#allocation2], %s502
        // Predicated region
        $region33: #{data_embedding_apply.1} parent=31 // pred_check
          %p504 = pneg %p127
        $region34: #{data_embedding_apply.1} parent=31 // pred_check_branch
          %506 = sbr.rel (%p504) target = $region36
        $region35: #{data_embedding_apply.1} parent=31 // pred_region
          %s508 = ssub.s32 256, 256
          %509 = vsyncadd %s500, %s508
          %s510 = smul.addr %s21, 2
          %s511 = sadd.s32 %s22, %s510
          %s512 = smul.addr %s511, 128
          %s513 = scalar_lea.hbm %s3, %s512
          %s514 = sshll.u32 %s503, 4
          %s515 = int_to_ptr.vmem [resolvable:$true] %s514
          %520 = dma.vmem_to_hbm [thread:$0]  %s515, 256, %s513, %s500, 128, 128, 8
        $region36: #{data_embedding_apply.1} parent=31 // pred_fallthru
          _
      $region32: #{data_embedding_apply.1} parent=5 // pred_fallthru
        _
      %p521 = scmp.le.s32.totalorder 2, %s12
      // Predicated region
      $region37: #{data_embedding_apply.1} parent=5 // pred_check
        %p522 = pneg %p521
      $region38: #{data_embedding_apply.1} parent=5 // pred_check_branch
        %524 = sbr.rel (%p522) target = $region40
      $region39: #{data_embedding_apply.1} parent=5 // pred_region
        %s525 = ssub.s32 %s12, 2
        // Predicated region
        $region41: #{data_embedding_apply.1} parent=39 // pred_check
          %p526 = pneg %p133
        $region42: #{data_embedding_apply.1} parent=39 // pred_check_branch
          %528 = sbr.rel (%p526) target = $region44
        $region43: #{data_embedding_apply.1} parent=39 // pred_region
          %s529 = sand.u32 %s118, 1
          %s530 = scalar_lea.sflag [#allocation3], %s529
          %s531 = sand.u32 %s118, 1
          %s532 = smul.addr %s531, 16
          %s533 = scalar_lea.vmem [#allocation2], %s532
          %534 = dma.done %s530, 256
        $region44: #{data_embedding_apply.1} parent=39 // pred_fallthru
          _
      $region40: #{data_embedding_apply.1} parent=5 // pred_fallthru
        _
    $region6: #{data_embedding_apply.1} parent=1 // loop_footer
      %s16 = sadd.s32 1, %s12
    $region7: #{data_embedding_apply.1} parent=1 // loop_footer_branch
      %11 = sbr.rel target = $region3
    $region8: #{data_embedding_apply.1} parent=1 // loop_exit
      _
    %535 = vsyncpa [#allocation3], 1
    %s536 = scalar_lea.sflag [#allocation3], 1
    %537 = vsyncpa %s536, 1

</llo_original>
